<compile_context>
chip_gen: v5e
topology: v5e:2x2
jax: 0.10.0
libtpu: 0.0.40
codegen_flags: <defaults>
</compile_context>

<pallas_src>
import functools

import jax
import jax.numpy as jnp
from jax.experimental import pallas as pl
from jax.experimental.pallas import tpu as pltpu

KH, KW = 3, 3
C_IN, C_OUT = 1, 32
KT = KH * KW + 1  # 9 conv taps + 1 bias column


def _conv_kernel(x_ref, w_ref, o_ref, im2col_ref, *, h, w):
    # x_ref:      (B_TILE, H*W)        flattened single-channel images (lane-dense)
    # w_ref:      (C_OUT, 10)          9 conv taps + bias column (augmented)
    # o_ref:      (B_TILE, C_OUT, OH*W) channel-major output, row stride W
    #                                   (columns >= OW per row are junk; wrapper drops them)
    # im2col_ref: (B_TILE, 10, OH*W)   VMEM scratch for the im2col tile
    hw = h * w
    oh = h - KH + 1
    wide = oh * w
    bt = o_ref.shape[0]

    x = x_ref[...].astype(jnp.float32)    # (B, H*W)
    wt = w_ref[...].astype(jnp.float32)   # (C_OUT, 10)

    # Bias row of the im2col tile (written every step: cheap, and safe under
    # megacore grid sharding where each core has its own scratch).
    im2col_ref[:, KH * KW, :] = jnp.ones((bt, wide), jnp.float32)

    # im2col: 9 shifted copies of each flattened image. Static lane rolls run on
    # the XLU. For kept output lanes q = i*W + j with j < OW we have
    # q + ki*W + kj < H*W, so the circular roll never wraps into positions the
    # wrapper keeps (junk only lands in the dropped j >= OW columns).
    for t in range(KH * KW):
        ki, kj = divmod(t, KW)
        s = ki * w + kj
        xs = x if s == 0 else pltpu.roll(x, shift=hw - s, axis=1)
        im2col_ref[:, t, :] = xs[:, :wide]

    # One MXU contraction per batch item: (32, 10) @ (10, OH*W) -> (32, OH*W),
    # f32 accumulation on the MXU result path instead of the vreg file.
    w_b = jnp.broadcast_to(wt[None], (bt, C_OUT, KT))          # tiny, once per step
    out = jax.lax.dot_general(
        w_b, im2col_ref[...],
        dimension_numbers=(((2,), (1,)), ((0,), (0,))),
        preferred_element_type=jnp.float32,
        precision=jax.lax.Precision.HIGHEST)                   # (B, C_OUT, OH*W)
    o_ref[...] = out.astype(o_ref.dtype)
    # TODO(synk): optional bf16 operands for bf16 models on v6e/v7x (halves
    # im2col traffic, doubles MXU rate; small precision delta vs f32 reference).


def _pick_batch_tile(n, h, w):
    """VMEM-budget- and generation-aware batch tile.

    * Budget: keep double-buffered x/out blocks plus in-kernel temporaries well
      inside the default scoped VMEM limit on every generation (v7x has only
      64 MiB physical VMEM).
    * v5e / v6e: single TensorCore, the grid is a serial loop -> prefer one long
      grid step (b_tile = n) whenever it fits the budget.
    * v7x: 2 TensorCores share the ("parallel",) grid -> prefer >= 2 grid steps
      when a legal split exists.
    * Legality: b_tile must divide n (no ragged edge block) and the input block
      (b_tile, H*W) needs its sublane dim to be a multiple of 8 or the full batch.
    """
    oh = h - KH + 1
    wide = oh * w
    kt_pad = ((KT + 7) // 8) * 8
    per_item = 4 * (2 * h * w            # x block, double-buffered
                    + 2 * C_OUT * wide   # out block, double-buffered
                    + kt_pad * wide      # im2col scratch
                    + C_OUT * 128        # broadcast weight tile (lane-padded)
                    + C_OUT * wide)      # matmul result value
    cap = max(1, (12 << 20) // per_item)

    try:
        two_tc = "7" in jax.devices()[0].device_kind   # v7x: 2 TensorCores
    except Exception:
        two_tc = False

    def legal(d):
        return n % d == 0 and d <= cap and (d % 8 == 0 or d == n)

    if two_tc and n > 1:
        for d in range(min(cap, n // 2), 0, -1):       # >= 2 grid steps on v7x
            if legal(d):
                return d
        # no legal split (tiny batch / no multiple-of-8 divisor): fall through.
    if legal(n):
        return n                                       # single long step
    for d in range(min(cap, n), 0, -1):
        if legal(d):
            return d
    return n  # nothing legal fits the budget; vmem_limit_bytes gives headroom.


def conv2d_pallas(x_nchw, w_oihw, bias):
    """Net.forward: y = conv1(x), conv1 = nn.Conv2d(1, 32, 3, 1). Returns NCHW."""
    n, c_in, h, w = x_nchw.shape
    assert c_in == C_IN
    assert w_oihw.shape == (C_OUT, C_IN, KH, KW)
    oh, ow = h - KH + 1, w - KW + 1
    wide = oh * w

    b_tile = _pick_batch_tile(n, h, w)
    grid = (n // b_tile,)

    # Host-side layout plumbing: contiguous reshapes only (no transposes).
    x_flat = x_nchw.reshape(n, h * w)                              # (N, H*W)
    w_aug = jnp.concatenate(
        [w_oihw.reshape(C_OUT, KH * KW), bias.reshape(C_OUT, 1)],
        axis=1)                                                    # (32, 10)

    out_wide = pl.pallas_call(
        functools.partial(_conv_kernel, h=h, w=w),
        out_shape=jax.ShapeDtypeStruct((n, C_OUT, wide), x_nchw.dtype),
        grid_spec=pltpu.PrefetchScalarGridSpec(
            num_scalar_prefetch=0,
            grid=grid,
            in_specs=[
                pl.BlockSpec((b_tile, h * w), lambda i: (i, 0)),
                pl.BlockSpec((C_OUT, KT), lambda i: (0, 0)),
            ],
            out_specs=pl.BlockSpec((b_tile, C_OUT, wide), lambda i: (i, 0, 0)),
            scratch_shapes=[pltpu.VMEM((b_tile, KT, wide), jnp.float32)],
        ),
        compiler_params=pltpu.CompilerParams(
            dimension_semantics=("parallel",),
            vmem_limit_bytes=32 * 1024 * 1024),
    )(x_flat, w_aug)

    # (N, 32, OH*W) -> (N, 32, OH, W) is a free contiguous reshape. Columns
    # j >= OW hold wrapped-garbage values; this slice is the only consumer of
    # out_wide, so nothing observes them.
    # TODO(synk): if Net grows a consumer (ReLU / next conv), fuse it into this
    # kernel or keep it in the wide (OH, W) layout so this slice never
    # materializes an extra HBM pass.
    return out_wide.reshape(n, C_OUT, oh, w)[:, :, :, :ow]


if __name__ == "__main__":
    key = jax.random.PRNGKey(0)
    kx, kw_, kb = jax.random.split(key, 3)

    # Small deterministic example consistent with Conv2d(1, 32, 3, 1): N=2, C=1, 16x16
    x = jax.random.normal(kx, (2, 1, 16, 16), dtype=jnp.float32)
    # PyTorch weight layout (O, I, KH, KW) = (32, 1, 3, 3)
    w = jax.random.normal(kw_, (C_OUT, C_IN, KH, KW), dtype=jnp.float32) * 0.1
    b = jax.random.normal(kb, (C_OUT,), dtype=jnp.float32) * 0.1

    y = conv2d_pallas(x, w, b)
    jax.block_until_ready(y)

    # Reference: same semantics as F.conv2d with stride 1, VALID padding.
    y_ref = jax.lax.conv_general_dilated(
        x, w, window_strides=(1, 1), padding="VALID",
        dimension_numbers=("NCHW", "OIHW", "NCHW"),
        precision=jax.lax.Precision.HIGHEST,
    ) + b[None, :, None, None]

    assert y.shape == (2, 32, 14, 14), y.shape
    max_err = float(jnp.max(jnp.abs(y - y_ref)))
    assert jnp.allclose(y, y_ref, atol=1e-2, rtol=1e-2), max_err
    print("KERNEL_OK")
</pallas_src>

<mosaic_0001>
module attributes {stable_mosaic.version = 11 : i64} {
  func.func @_conv_kernel(%arg0: i32, %arg1: memref<2x256xf32, #tpu.memory_space<vmem>>, %arg2: memref<32x10xf32, #tpu.memory_space<vmem>>, %arg3: memref<2x32x224xf32, #tpu.memory_space<vmem>>, %arg4: memref<2x10x224xf32, #tpu.memory_space<vmem>>) attributes {dimension_semantics = [#tpu.dimension_semantics<parallel>], iteration_bounds = array<i64: 1>, scalar_prefetch = 0 : i64, scratch_operands = 1 : i64, tpu.core_type = #tpu.core_type<tc>, window_params = [{transform_indices = @transform_0, window_bounds = array<i64: 2, 256>}, {pipeline_mode = #tpu.pipeline_mode<synchronous>, transform_indices = @transform_1, window_bounds = array<i64: 32, 10>}, {transform_indices = @transform_2, window_bounds = array<i64: 2, 32, 224>}]} {
    %c0 = arith.constant 0 : index
    %c0_0 = arith.constant 0 : index
    %0 = vector.load %arg1[%c0, %c0_0] : memref<2x256xf32, #tpu.memory_space<vmem>>, vector<2x256xf32>
    %c0_1 = arith.constant 0 : index
    %c0_2 = arith.constant 0 : index
    %1 = vector.load %arg2[%c0_1, %c0_2] : memref<32x10xf32, #tpu.memory_space<vmem>>, vector<32x10xf32>
    %cst = arith.constant 1.000000e+00 : f32
    %2 = vector.broadcast %cst : f32 to vector<2x224xf32>
    %c0_3 = arith.constant 0 : index
    %c9 = arith.constant 9 : index
    %c0_4 = arith.constant 0 : index
    %3 = vector.load %arg4[%c0_3, %c9, %c0_4] : memref<2x10x224xf32, #tpu.memory_space<vmem>>, vector<2x1x224xf32>
    %4 = vector.shape_cast %3 : vector<2x1x224xf32> to vector<2x224xf32>
    %5 = vector.shape_cast %2 : vector<2x224xf32> to vector<2x1x224xf32>
    tpu.vector_store %arg4[%c0_3, %c9, %c0_4], %5 {strides = array<i32>} : memref<2x10x224xf32, #tpu.memory_space<vmem>>, vector<2x1x224xf32>,
    %6 = vector.extract_strided_slice %0 {offsets = [0, 0], sizes = [2, 224], strides = [1, 1]} : vector<2x256xf32> to vector<2x224xf32>
    %c0_5 = arith.constant 0 : index
    %c0_6 = arith.constant 0 : index
    %c0_7 = arith.constant 0 : index
    %7 = vector.load %arg4[%c0_5, %c0_6, %c0_7] : memref<2x10x224xf32, #tpu.memory_space<vmem>>, vector<2x1x224xf32>
    %8 = vector.shape_cast %7 : vector<2x1x224xf32> to vector<2x224xf32>
    %9 = vector.shape_cast %6 : vector<2x224xf32> to vector<2x1x224xf32>
    tpu.vector_store %arg4[%c0_5, %c0_6, %c0_7], %9 {strides = array<i32>} : memref<2x10x224xf32, #tpu.memory_space<vmem>>, vector<2x1x224xf32>,
    %c255_i32 = arith.constant 255 : i32
    %10 = tpu.dynamic_rotate %0 by %c255_i32 dim 1 : vector<2x256xf32>, i32 -> vector<2x256xf32>
    %11 = vector.extract_strided_slice %10 {offsets = [0, 0], sizes = [2, 224], strides = [1, 1]} : vector<2x256xf32> to vector<2x224xf32>
    %c0_8 = arith.constant 0 : index
    %c1 = arith.constant 1 : index
    %c0_9 = arith.constant 0 : index
    %12 = vector.load %arg4[%c0_8, %c1, %c0_9] : memref<2x10x224xf32, #tpu.memory_space<vmem>>, vector<2x1x224xf32>
    %13 = vector.shape_cast %12 : vector<2x1x224xf32> to vector<2x224xf32>
    %14 = vector.shape_cast %11 : vector<2x224xf32> to vector<2x1x224xf32>
    tpu.vector_store %arg4[%c0_8, %c1, %c0_9], %14 {strides = array<i32>} : memref<2x10x224xf32, #tpu.memory_space<vmem>>, vector<2x1x224xf32>,
    %c254_i32 = arith.constant 254 : i32
    %15 = tpu.dynamic_rotate %0 by %c254_i32 dim 1 : vector<2x256xf32>, i32 -> vector<2x256xf32>
    %16 = vector.extract_strided_slice %15 {offsets = [0, 0], sizes = [2, 224], strides = [1, 1]} : vector<2x256xf32> to vector<2x224xf32>
    %c0_10 = arith.constant 0 : index
    %c2 = arith.constant 2 : index
    %c0_11 = arith.constant 0 : index
    %17 = vector.load %arg4[%c0_10, %c2, %c0_11] : memref<2x10x224xf32, #tpu.memory_space<vmem>>, vector<2x1x224xf32>
    %18 = vector.shape_cast %17 : vector<2x1x224xf32> to vector<2x224xf32>
    %19 = vector.shape_cast %16 : vector<2x224xf32> to vector<2x1x224xf32>
    tpu.vector_store %arg4[%c0_10, %c2, %c0_11], %19 {strides = array<i32>} : memref<2x10x224xf32, #tpu.memory_space<vmem>>, vector<2x1x224xf32>,
    %c240_i32 = arith.constant 240 : i32
    %20 = tpu.dynamic_rotate %0 by %c240_i32 dim 1 : vector<2x256xf32>, i32 -> vector<2x256xf32>
    %21 = vector.extract_strided_slice %20 {offsets = [0, 0], sizes = [2, 224], strides = [1, 1]} : vector<2x256xf32> to vector<2x224xf32>
    %c0_12 = arith.constant 0 : index
    %c3 = arith.constant 3 : index
    %c0_13 = arith.constant 0 : index
    %22 = vector.load %arg4[%c0_12, %c3, %c0_13] : memref<2x10x224xf32, #tpu.memory_space<vmem>>, vector<2x1x224xf32>
    %23 = vector.shape_cast %22 : vector<2x1x224xf32> to vector<2x224xf32>
    %24 = vector.shape_cast %21 : vector<2x224xf32> to vector<2x1x224xf32>
    tpu.vector_store %arg4[%c0_12, %c3, %c0_13], %24 {strides = array<i32>} : memref<2x10x224xf32, #tpu.memory_space<vmem>>, vector<2x1x224xf32>,
    %c239_i32 = arith.constant 239 : i32
    %25 = tpu.dynamic_rotate %0 by %c239_i32 dim 1 : vector<2x256xf32>, i32 -> vector<2x256xf32>
    %26 = vector.extract_strided_slice %25 {offsets = [0, 0], sizes = [2, 224], strides = [1, 1]} : vector<2x256xf32> to vector<2x224xf32>
    %c0_14 = arith.constant 0 : index
    %c4 = arith.constant 4 : index
    %c0_15 = arith.constant 0 : index
    %27 = vector.load %arg4[%c0_14, %c4, %c0_15] : memref<2x10x224xf32, #tpu.memory_space<vmem>>, vector<2x1x224xf32>
    %28 = vector.shape_cast %27 : vector<2x1x224xf32> to vector<2x224xf32>
    %29 = vector.shape_cast %26 : vector<2x224xf32> to vector<2x1x224xf32>
    tpu.vector_store %arg4[%c0_14, %c4, %c0_15], %29 {strides = array<i32>} : memref<2x10x224xf32, #tpu.memory_space<vmem>>, vector<2x1x224xf32>,
    %c238_i32 = arith.constant 238 : i32
    %30 = tpu.dynamic_rotate %0 by %c238_i32 dim 1 : vector<2x256xf32>, i32 -> vector<2x256xf32>
    %31 = vector.extract_strided_slice %30 {offsets = [0, 0], sizes = [2, 224], strides = [1, 1]} : vector<2x256xf32> to vector<2x224xf32>
    %c0_16 = arith.constant 0 : index
    %c5 = arith.constant 5 : index
    %c0_17 = arith.constant 0 : index
    %32 = vector.load %arg4[%c0_16, %c5, %c0_17] : memref<2x10x224xf32, #tpu.memory_space<vmem>>, vector<2x1x224xf32>
    %33 = vector.shape_cast %32 : vector<2x1x224xf32> to vector<2x224xf32>
    %34 = vector.shape_cast %31 : vector<2x224xf32> to vector<2x1x224xf32>
    tpu.vector_store %arg4[%c0_16, %c5, %c0_17], %34 {strides = array<i32>} : memref<2x10x224xf32, #tpu.memory_space<vmem>>, vector<2x1x224xf32>,
    %c224_i32 = arith.constant 224 : i32
    %35 = tpu.dynamic_rotate %0 by %c224_i32 dim 1 : vector<2x256xf32>, i32 -> vector<2x256xf32>
    %36 = vector.extract_strided_slice %35 {offsets = [0, 0], sizes = [2, 224], strides = [1, 1]} : vector<2x256xf32> to vector<2x224xf32>
    %c0_18 = arith.constant 0 : index
    %c6 = arith.constant 6 : index
    %c0_19 = arith.constant 0 : index
    %37 = vector.load %arg4[%c0_18, %c6, %c0_19] : memref<2x10x224xf32, #tpu.memory_space<vmem>>, vector<2x1x224xf32>
    %38 = vector.shape_cast %37 : vector<2x1x224xf32> to vector<2x224xf32>
    %39 = vector.shape_cast %36 : vector<2x224xf32> to vector<2x1x224xf32>
    tpu.vector_store %arg4[%c0_18, %c6, %c0_19], %39 {strides = array<i32>} : memref<2x10x224xf32, #tpu.memory_space<vmem>>, vector<2x1x224xf32>,
    %c223_i32 = arith.constant 223 : i32
    %40 = tpu.dynamic_rotate %0 by %c223_i32 dim 1 : vector<2x256xf32>, i32 -> vector<2x256xf32>
    %41 = vector.extract_strided_slice %40 {offsets = [0, 0], sizes = [2, 224], strides = [1, 1]} : vector<2x256xf32> to vector<2x224xf32>
    %c0_20 = arith.constant 0 : index
    %c7 = arith.constant 7 : index
    %c0_21 = arith.constant 0 : index
    %42 = vector.load %arg4[%c0_20, %c7, %c0_21] : memref<2x10x224xf32, #tpu.memory_space<vmem>>, vector<2x1x224xf32>
    %43 = vector.shape_cast %42 : vector<2x1x224xf32> to vector<2x224xf32>
    %44 = vector.shape_cast %41 : vector<2x224xf32> to vector<2x1x224xf32>
    tpu.vector_store %arg4[%c0_20, %c7, %c0_21], %44 {strides = array<i32>} : memref<2x10x224xf32, #tpu.memory_space<vmem>>, vector<2x1x224xf32>,
    %c222_i32 = arith.constant 222 : i32
    %45 = tpu.dynamic_rotate %0 by %c222_i32 dim 1 : vector<2x256xf32>, i32 -> vector<2x256xf32>
    %46 = vector.extract_strided_slice %45 {offsets = [0, 0], sizes = [2, 224], strides = [1, 1]} : vector<2x256xf32> to vector<2x224xf32>
    %c0_22 = arith.constant 0 : index
    %c8 = arith.constant 8 : index
    %c0_23 = arith.constant 0 : index
    %47 = vector.load %arg4[%c0_22, %c8, %c0_23] : memref<2x10x224xf32, #tpu.memory_space<vmem>>, vector<2x1x224xf32>
    %48 = vector.shape_cast %47 : vector<2x1x224xf32> to vector<2x224xf32>
    %49 = vector.shape_cast %46 : vector<2x224xf32> to vector<2x1x224xf32>
    tpu.vector_store %arg4[%c0_22, %c8, %c0_23], %49 {strides = array<i32>} : memref<2x10x224xf32, #tpu.memory_space<vmem>>, vector<2x1x224xf32>,
    %50 = vector.shape_cast %1 : vector<32x10xf32> to vector<1x32x10xf32>
    %51 = vector.shape_cast %50 : vector<1x32x10xf32> to vector<1x32x10xf32>
    %52 = vector.broadcast %51 : vector<1x32x10xf32> to vector<2x32x10xf32>
    %c0_24 = arith.constant 0 : index
    %c0_25 = arith.constant 0 : index
    %c0_26 = arith.constant 0 : index
    %53 = vector.load %arg4[%c0_24, %c0_25, %c0_26] : memref<2x10x224xf32, #tpu.memory_space<vmem>>, vector<2x10x224xf32>
    %cst_27 = arith.constant dense<0.000000e+00> : vector<2x32x224xf32>
    %54 = tpu.matmul %52, %53, %cst_27 {dimension_numbers = #tpu.dot_dimension_numbers<[2], [1], [1], [2], [0, 0, 0, 1, 1, 2], [0], [0]>, precision = #tpu.contract_precision<fp32>} : vector<2x32x10xf32>, vector<2x10x224xf32>, vector<2x32x224xf32> -> vector<2x32x224xf32>
    %c0_28 = arith.constant 0 : index
    %c0_29 = arith.constant 0 : index
    %c0_30 = arith.constant 0 : index
    %55 = vector.load %arg3[%c0_28, %c0_29, %c0_30] : memref<2x32x224xf32, #tpu.memory_space<vmem>>, vector<2x32x224xf32>
    tpu.vector_store %arg3[%c0_28, %c0_29, %c0_30], %54 {strides = array<i32>} : memref<2x32x224xf32, #tpu.memory_space<vmem>>, vector<2x32x224xf32>,
    return
  }
  func.func @transform_0(%arg0: i32) -> (i32, i32) {
    %c0_i32 = arith.constant 0 : i32
    %c0_i32_0 = arith.constant 0 : i32
    return %arg0, %c0_i32 : i32, i32
  }
  func.func @transform_1(%arg0: i32) -> (i32, i32) {
    %c0_i32 = arith.constant 0 : i32
    %c0_i32_0 = arith.constant 0 : i32
    %c0_i32_1 = arith.constant 0 : i32
    return %c0_i32, %c0_i32_0 : i32, i32
  }
  func.func @transform_2(%arg0: i32) -> (i32, i32, i32) {
    %c0_i32 = arith.constant 0 : i32
    %c0_i32_0 = arith.constant 0 : i32
    %c0_i32_1 = arith.constant 0 : i32
    return %arg0, %c0_i32, %c0_i32_0 : i32, i32, i32
  }
}

</mosaic_0001>

<llo_original>
// kernel: tpu_custom_call.1
$region0: #{tpu_custom_call.1}
  #allocation0 [shape = 'u32[]', space=smem, size = 0x4, offset = 0x4, fixed_abs, tag = 'smem constant byte address 0x4 - core index']
  #allocation1 [shape = 'u32[72,128]{1,0:T(1,128)}', space=vmem, size = 0x9000, scoped, tag = 'internal scratch']
  #allocation2 [shape = 'f32[2,10,224]{2,1,0:T(8,128)}', space=vmem, size = 0x8000, scoped, tag = 'scratch operand']
  %s0 = inlined_call_operand.vmem [shape: f32[2,256], index: 0, kind: input, shape index: {}]
  %s1 = inlined_call_operand.vmem [shape: f32[32,10], index: 1, kind: input, shape index: {}]
  %s2 = inlined_call_operand.hbm [shape: f32[2,32,224], index: 2, kind: output, shape index: {}]
  %s3 = sld [smem:[#allocation0]]
  $region18: #{tpu_custom_call.1} parent=0
    _
  %s5 = ssub.s32 1, %s3
  %s6 = scalar_select 0, %s5, %s3
  $region1: #{tpu_custom_call.1} parent=0
    #allocation3 [shape = 'u8[65536]{0}', space=vmem, size = 0x10000, scoped, tag = 'output window, operand 0, single buffered']
    #allocation4 [shape = 's32[1]{0}', space=sflag, size = 0x4, scoped, tag = 'scoped memory for tpu_custom_call.1']
    %7 = vsyncpa [#allocation4], 0
    // Predicated region
    $region2: #{tpu_custom_call.1} parent=1 // pred_check
      _
    $region3: #{tpu_custom_call.1} parent=1 // pred_check_branch
      %9 = sbr.rel (0) target = $region5
    $region4: #{tpu_custom_call.1} parent=1 // pred_region
      _
    $region5: #{tpu_custom_call.1} parent=1 // pred_fallthru
      _
    // Predicated region
    $region6: #{tpu_custom_call.1} parent=1 // pred_check
      _
    $region7: #{tpu_custom_call.1} parent=1 // pred_check_branch
      %11 = sbr.rel (0) target = $region9
    $region8: #{tpu_custom_call.1} parent=1 // pred_region
      _
    $region9: #{tpu_custom_call.1} parent=1 // pred_fallthru
      _
    %v12 = vld [vmem:[%s0] sm:$0xf]
    %v13 = vld [vmem:[%s1] sm:$0xff]
    %v14 = vld [vmem:[%s1 + $0x8] sm:$0xff]
    %v15 = vld [vmem:[%s1 + $0x10] sm:$0xff]
    %v16 = vld [vmem:[%s1 + $0x18] sm:$0xff]
    %v17 = vlaneseq
    %vm18 = vcmp.ge.s32.totalorder %v17, 0
    %vm19 = vcmp.lt.s32.totalorder %v17, 224
    %vm20 = vmand %vm18, %vm19
    %s21 = scalar_lea.vmem [#allocation2], 17
    %22 = vst.msk [vmem:[%s21] ss:$8 sm:$0x3] %vm20, 1.0
    %23 = vst.msk [vmem:[%s21] ss:$8 sm:$0x0] %vm20, 1.0
    %s24 = scalar_lea.vmem [#allocation2], 49
    %25 = vst.msk [vmem:[%s24] ss:$8 sm:$0x3] %vm20, 1.0
    %26 = vst.msk [vmem:[%s24] ss:$8 sm:$0x0] %vm20, 1.0
    %v28 = vrot.slane %v12, 1
    %v29 = vrot.slane %v12, 2
    %v30 = vrot.slane %v12, 3
    %vm31 = vcmask 1040384
    %v32 = vsel %vm31, %v12, %v28
    %vm33 = vcmask 1042434
    %v34 = vsel %vm33, %v29, %v30
    %vm35 = vcmask 1041408
    %v36 = vsel %vm35, %v32, %v34
    %vm37 = vcmask 1041409
    %v38 = vsel %vm37, %v12, %v28
    %vm39 = vcmask 1043459
    %v40 = vsel %vm39, %v29, %v30
    %vm41 = vcmask 1042433
    %v42 = vsel %vm41, %v38, %v40
    %v43 = vrot.slane %v42, 1
    %46 = vst.msk [vmem:[#allocation2] ss:$8 sm:$0x3] %vm20, %v36
    %47 = vst.msk [vmem:[#allocation2] ss:$8 sm:$0x0] %vm20, %v36
    %s48 = scalar_lea.vmem [#allocation2], 32
    %49 = vst.msk [vmem:[%s48] ss:$8 sm:$0x3] %vm20, %v43
    %50 = vst.msk [vmem:[%s48] ss:$8 sm:$0x0] %vm20, %v43
    %51 = vst [vmem:[#allocation1] ss:$4 sm:$0xff] %v12
    %v52 = vld.sshfl [vmem:[#allocation1] sm:$0xff pattern:$0x73625140]
    %v53 = vld.sshfl [vmem:[#allocation1 + $0x8] sm:$0xff pattern:$0x73625140]
    %56 = vrot.lane.b32.xlu0 %v52, 127
    %v57 = vpop.permute.xlu0 %56
    %58 = vrot.lane.b32.xlu0 %v53, 127
    %v59 = vpop.permute.xlu0 %58
    %v60 = vlaneseq
    %v61 = vand.u32 %v60, 127
    %vm62 = vcmp.lt.s32.totalorder %v61, 127
    %v63 = vsel %vm62, %v57, %v59
    %v64 = vsel %vm62, %v59, %v57
    %v67 = vrot.slane %v64, 7
    %v68 = vsel %vm31, %v63, %v67
    %v69 = vsel %vm37, %v63, %v67
    %v70 = vrot.slane %v69, 1
    %s73 = scalar_lea.vmem [#allocation2], 1
    %74 = vst.msk [vmem:[%s73] ss:$8 sm:$0x3] %vm20, %v68
    %75 = vst.msk [vmem:[%s73] ss:$8 sm:$0x0] %vm20, %v68
    %s76 = scalar_lea.vmem [#allocation2], 33
    %77 = vst.msk [vmem:[%s76] ss:$8 sm:$0x3] %vm20, %v70
    %78 = vst.msk [vmem:[%s76] ss:$8 sm:$0x0] %vm20, %v70
    %79 = vst [vmem:[#allocation1] ss:$4 sm:$0xff] %v12
    %v80 = vld.sshfl [vmem:[#allocation1] sm:$0xff pattern:$0x73625140]
    %v81 = vld.sshfl [vmem:[#allocation1 + $0x8] sm:$0xff pattern:$0x73625140]
    %84 = vrot.lane.b32.xlu0 %v80, 126
    %v85 = vpop.permute.xlu0 %84
    %86 = vrot.lane.b32.xlu0 %v81, 126
    %v87 = vpop.permute.xlu0 %86
    %vm88 = vcmp.lt.s32.totalorder %v61, 126
    %v89 = vsel %vm88, %v85, %v87
    %v90 = vsel %vm88, %v87, %v85
    %v93 = vrot.slane %v90, 7
    %v94 = vsel %vm31, %v89, %v93
    %v95 = vsel %vm37, %v89, %v93
    %v96 = vrot.slane %v95, 1
    %s99 = scalar_lea.vmem [#allocation2], 2
    %100 = vst.msk [vmem:[%s99] ss:$8 sm:$0x3] %vm20, %v94
    %101 = vst.msk [vmem:[%s99] ss:$8 sm:$0x0] %vm20, %v94
    %s102 = scalar_lea.vmem [#allocation2], 34
    %103 = vst.msk [vmem:[%s102] ss:$8 sm:$0x3] %vm20, %v96
    %104 = vst.msk [vmem:[%s102] ss:$8 sm:$0x0] %vm20, %v96
    %105 = vst [vmem:[#allocation1] ss:$4 sm:$0xff] %v12
    %v106 = vld.sshfl [vmem:[#allocation1] sm:$0xff pattern:$0x73625140]
    %v107 = vld.sshfl [vmem:[#allocation1 + $0x8] sm:$0xff pattern:$0x73625140]
    %110 = vrot.lane.b32.xlu0 %v106, 112
    %v111 = vpop.permute.xlu0 %110
    %112 = vrot.lane.b32.xlu0 %v107, 112
    %v113 = vpop.permute.xlu0 %112
    %vm114 = vcmp.lt.s32.totalorder %v61, 112
    %v115 = vsel %vm114, %v111, %v113
    %v116 = vsel %vm114, %v113, %v111
    %v119 = vrot.slane %v116, 7
    %v120 = vsel %vm31, %v115, %v119
    %v121 = vsel %vm37, %v115, %v119
    %v122 = vrot.slane %v121, 1
    %s125 = scalar_lea.vmem [#allocation2], 3
    %126 = vst.msk [vmem:[%s125] ss:$8 sm:$0x3] %vm20, %v120
    %127 = vst.msk [vmem:[%s125] ss:$8 sm:$0x0] %vm20, %v120
    %s128 = scalar_lea.vmem [#allocation2], 35
    %129 = vst.msk [vmem:[%s128] ss:$8 sm:$0x3] %vm20, %v122
    %130 = vst.msk [vmem:[%s128] ss:$8 sm:$0x0] %vm20, %v122
    %131 = vst [vmem:[#allocation1] ss:$4 sm:$0xff] %v12
    %v132 = vld.sshfl [vmem:[#allocation1] sm:$0xff pattern:$0x73625140]
    %v133 = vld.sshfl [vmem:[#allocation1 + $0x8] sm:$0xff pattern:$0x73625140]
    %136 = vrot.lane.b32.xlu0 %v132, 111
    %v137 = vpop.permute.xlu0 %136
    %138 = vrot.lane.b32.xlu0 %v133, 111
    %v139 = vpop.permute.xlu0 %138
    %vm140 = vcmp.lt.s32.totalorder %v61, 111
    %v141 = vsel %vm140, %v137, %v139
    %v142 = vsel %vm140, %v139, %v137
    %v145 = vrot.slane %v142, 7
    %v146 = vsel %vm31, %v141, %v145
    %v147 = vsel %vm37, %v141, %v145
    %v148 = vrot.slane %v147, 1
    %s151 = scalar_lea.vmem [#allocation2], 4
    %152 = vst.msk [vmem:[%s151] ss:$8 sm:$0x3] %vm20, %v146
    %153 = vst.msk [vmem:[%s151] ss:$8 sm:$0x0] %vm20, %v146
    %s154 = scalar_lea.vmem [#allocation2], 36
    %155 = vst.msk [vmem:[%s154] ss:$8 sm:$0x3] %vm20, %v148
    %156 = vst.msk [vmem:[%s154] ss:$8 sm:$0x0] %vm20, %v148
    %157 = vst [vmem:[#allocation1] ss:$4 sm:$0xff] %v12
    %v158 = vld.sshfl [vmem:[#allocation1] sm:$0xff pattern:$0x73625140]
    %v159 = vld.sshfl [vmem:[#allocation1 + $0x8] sm:$0xff pattern:$0x73625140]
    %162 = vrot.lane.b32.xlu0 %v158, 110
    %v163 = vpop.permute.xlu0 %162
    %164 = vrot.lane.b32.xlu0 %v159, 110
    %v165 = vpop.permute.xlu0 %164
    %vm166 = vcmp.lt.s32.totalorder %v61, 110
    %v167 = vsel %vm166, %v163, %v165
    %v168 = vsel %vm166, %v165, %v163
    %v171 = vrot.slane %v168, 7
    %v172 = vsel %vm31, %v167, %v171
    %v173 = vsel %vm37, %v167, %v171
    %v174 = vrot.slane %v173, 1
    %s177 = scalar_lea.vmem [#allocation2], 5
    %178 = vst.msk [vmem:[%s177] ss:$8 sm:$0x3] %vm20, %v172
    %179 = vst.msk [vmem:[%s177] ss:$8 sm:$0x0] %vm20, %v172
    %s180 = scalar_lea.vmem [#allocation2], 37
    %181 = vst.msk [vmem:[%s180] ss:$8 sm:$0x3] %vm20, %v174
    %182 = vst.msk [vmem:[%s180] ss:$8 sm:$0x0] %vm20, %v174
    %183 = vst [vmem:[#allocation1] ss:$4 sm:$0xff] %v12
    %v184 = vld.sshfl [vmem:[#allocation1] sm:$0xff pattern:$0x73625140]
    %v185 = vld.sshfl [vmem:[#allocation1 + $0x8] sm:$0xff pattern:$0x73625140]
    %188 = vrot.lane.b32.xlu0 %v184, 96
    %v189 = vpop.permute.xlu0 %188
    %190 = vrot.lane.b32.xlu0 %v185, 96
    %v191 = vpop.permute.xlu0 %190
    %vm192 = vcmp.lt.s32.totalorder %v61, 96
    %v193 = vsel %vm192, %v189, %v191
    %v194 = vsel %vm192, %v191, %v189
    %v197 = vrot.slane %v194, 7
    %v198 = vsel %vm31, %v193, %v197
    %v199 = vsel %vm37, %v193, %v197
    %v200 = vrot.slane %v199, 1
    %s203 = scalar_lea.vmem [#allocation2], 6
    %204 = vst.msk [vmem:[%s203] ss:$8 sm:$0x3] %vm20, %v198
    %205 = vst.msk [vmem:[%s203] ss:$8 sm:$0x0] %vm20, %v198
    %s206 = scalar_lea.vmem [#allocation2], 38
    %207 = vst.msk [vmem:[%s206] ss:$8 sm:$0x3] %vm20, %v200
    %208 = vst.msk [vmem:[%s206] ss:$8 sm:$0x0] %vm20, %v200
    %209 = vst [vmem:[#allocation1] ss:$4 sm:$0xff] %v12
    %v210 = vld.sshfl [vmem:[#allocation1] sm:$0xff pattern:$0x73625140]
    %v211 = vld.sshfl [vmem:[#allocation1 + $0x8] sm:$0xff pattern:$0x73625140]
    %214 = vrot.lane.b32.xlu0 %v210, 95
    %v215 = vpop.permute.xlu0 %214
    %216 = vrot.lane.b32.xlu0 %v211, 95
    %v217 = vpop.permute.xlu0 %216
    %vm218 = vcmp.lt.s32.totalorder %v61, 95
    %v219 = vsel %vm218, %v215, %v217
    %v220 = vsel %vm218, %v217, %v215
    %v223 = vrot.slane %v220, 7
    %v224 = vsel %vm31, %v219, %v223
    %v225 = vsel %vm37, %v219, %v223
    %v226 = vrot.slane %v225, 1
    %s229 = scalar_lea.vmem [#allocation2], 7
    %230 = vst.msk [vmem:[%s229] ss:$8 sm:$0x3] %vm20, %v224
    %231 = vst.msk [vmem:[%s229] ss:$8 sm:$0x0] %vm20, %v224
    %s232 = scalar_lea.vmem [#allocation2], 39
    %233 = vst.msk [vmem:[%s232] ss:$8 sm:$0x3] %vm20, %v226
    %234 = vst.msk [vmem:[%s232] ss:$8 sm:$0x0] %vm20, %v226
    %235 = vst [vmem:[#allocation1] ss:$4 sm:$0xff] %v12
    %v236 = vld.sshfl [vmem:[#allocation1] sm:$0xff pattern:$0x73625140]
    %v237 = vld.sshfl [vmem:[#allocation1 + $0x8] sm:$0xff pattern:$0x73625140]
    %240 = vrot.lane.b32.xlu0 %v236, 94
    %v241 = vpop.permute.xlu0 %240
    %242 = vrot.lane.b32.xlu0 %v237, 94
    %v243 = vpop.permute.xlu0 %242
    %vm244 = vcmp.lt.s32.totalorder %v61, 94
    %v245 = vsel %vm244, %v241, %v243
    %v246 = vsel %vm244, %v243, %v241
    %v249 = vrot.slane %v246, 7
    %v250 = vsel %vm31, %v245, %v249
    %v251 = vsel %vm37, %v245, %v249
    %v252 = vrot.slane %v251, 1
    %s255 = scalar_lea.vmem [#allocation2], 16
    %256 = vst.msk [vmem:[%s255] ss:$8 sm:$0x3] %vm20, %v250
    %257 = vst.msk [vmem:[%s255] ss:$8 sm:$0x0] %vm20, %v250
    %s258 = scalar_lea.vmem [#allocation2], 48
    %259 = vst.msk [vmem:[%s258] ss:$8 sm:$0x3] %vm20, %v252
    %260 = vst.msk [vmem:[%s258] ss:$8 sm:$0x0] %vm20, %v252
    %v261 = vld [vmem:[#allocation2] sm:$0xff]
    %v262 = vld [vmem:[#allocation2 + $0x8] sm:$0xff]
    %v263 = vld [vmem:[#allocation2 + $0x10] sm:$0x3]
    %v264 = vld [vmem:[#allocation2 + $0x18] sm:$0x3]
    %v265 = vld [vmem:[#allocation2 + $0x20] sm:$0xff]
    %v266 = vld [vmem:[#allocation2 + $0x28] sm:$0xff]
    %v267 = vld [vmem:[#allocation2 + $0x30] sm:$0x3]
    %v268 = vld [vmem:[#allocation2 + $0x38] sm:$0x3]
    %vm269 = vcmask 80896
    %v271 = vsel %vm269, %v13, 0
    %v274 = vsel %vm269, %v14, 0
    %v277 = vsel %vm269, %v15, 0
    %v280 = vsel %vm269, %v16, 0
    %v283 = vsel %vm35, %v263, 0
    %v286 = vsel %vm35, %v264, 0
    %288 = vmatpush.msra.mxu0 0.0
    %289 = vmatpush.msra.mxu0 0.0
    %290 = vmatpush.msra.mxu0 0.0
    %291 = vmatpush.msra.mxu0 0.0
    %292 = vmatpush.msra.mxu0 0.0
    %293 = vmatpush.msra.mxu0 0.0
    %294 = vmatpush.msra.mxu0 0.0
    %295 = vmatpush.msra.mxu0 0.0
    %296 = vmatpush.msra.mxu0 0.0
    %297 = vmatpush.msra.mxu0 0.0
    %298 = vmatpush.msra.mxu0 0.0
    %299 = vmatpush.msra.mxu0 0.0
    %300 = vmatpush.msra.mxu0 0.0
    %301 = vmatpush.msra.mxu0 0.0
    %v302 = vand.u32 %v283, 4294901760
    %303 = vmatpush.msra.mxu0 %v302
    %v304 = vand.u32 %v261, 4294901760
    %305 = vmatpush.msra.mxu0 %v304
    %v306 = vand.u32 %v271, 4294901760
    %v307 = vsub.f32 %v271, %v306
    %v308 = vand.u32 %v307, 4294901760
    %v309 = vsub.f32 %v307, %v308
    %v310 = vand.u32 %v309, 4294901760
    %311 = vmatmul.f32.gmra.mxu0 %v310
    %v312 = vpop.f32.mrf.mxu0
    %v313 = vadd.f32 0.0, %v312
    %v314 = vand.u32 %v274, 4294901760
    %v315 = vsub.f32 %v274, %v314
    %v316 = vand.u32 %v315, 4294901760
    %v317 = vsub.f32 %v315, %v316
    %v318 = vand.u32 %v317, 4294901760
    %319 = vmatmul.f32.gmra.mxu0 %v318
    %v320 = vpop.f32.mrf.mxu0
    %v321 = vadd.f32 0.0, %v320
    %v322 = vand.u32 %v277, 4294901760
    %v323 = vsub.f32 %v277, %v322
    %v324 = vand.u32 %v323, 4294901760
    %v325 = vsub.f32 %v323, %v324
    %v326 = vand.u32 %v325, 4294901760
    %327 = vmatmul.f32.gmra.mxu0 %v326
    %v328 = vpop.f32.mrf.mxu0
    %v329 = vadd.f32 0.0, %v328
    %v330 = vand.u32 %v280, 4294901760
    %v331 = vsub.f32 %v280, %v330
    %v332 = vand.u32 %v331, 4294901760
    %v333 = vsub.f32 %v331, %v332
    %v334 = vand.u32 %v333, 4294901760
    %335 = vmatmul.f32.gmra.mxu0 %v334
    %v336 = vpop.f32.mrf.mxu0
    %v337 = vadd.f32 0.0, %v336
    %338 = vdwg.mxu0
    %339 = vmatpush.msra.mxu0 0.0
    %340 = vmatpush.msra.mxu0 0.0
    %341 = vmatpush.msra.mxu0 0.0
    %342 = vmatpush.msra.mxu0 0.0
    %343 = vmatpush.msra.mxu0 0.0
    %344 = vmatpush.msra.mxu0 0.0
    %345 = vmatpush.msra.mxu0 0.0
    %346 = vmatpush.msra.mxu0 0.0
    %347 = vmatpush.msra.mxu0 0.0
    %348 = vmatpush.msra.mxu0 0.0
    %349 = vmatpush.msra.mxu0 0.0
    %350 = vmatpush.msra.mxu0 0.0
    %351 = vmatpush.msra.mxu0 0.0
    %352 = vmatpush.msra.mxu0 0.0
    %v353 = vand.u32 %v283, 4294901760
    %v354 = vsub.f32 %v283, %v353
    %v355 = vand.u32 %v354, 4294901760
    %v356 = vsub.f32 %v354, %v355
    %v357 = vand.u32 %v356, 4294901760
    %358 = vmatpush.msra.mxu0 %v357
    %v359 = vand.u32 %v261, 4294901760
    %v360 = vsub.f32 %v261, %v359
    %v361 = vand.u32 %v360, 4294901760
    %v362 = vsub.f32 %v360, %v361
    %v363 = vand.u32 %v362, 4294901760
    %364 = vmatpush.msra.mxu0 %v363
    %v365 = vand.u32 %v271, 4294901760
    %366 = vmatmul.f32.gmra.mxu0 %v365
    %v367 = vpop.f32.mrf.mxu0
    %v368 = vadd.f32 %v313, %v367
    %v369 = vand.u32 %v274, 4294901760
    %370 = vmatmul.f32.gmra.mxu0 %v369
    %v371 = vpop.f32.mrf.mxu0
    %v372 = vadd.f32 %v321, %v371
    %v373 = vand.u32 %v277, 4294901760
    %374 = vmatmul.f32.gmra.mxu0 %v373
    %v375 = vpop.f32.mrf.mxu0
    %v376 = vadd.f32 %v329, %v375
    %v377 = vand.u32 %v280, 4294901760
    %378 = vmatmul.f32.gmra.mxu0 %v377
    %v379 = vpop.f32.mrf.mxu0
    %v380 = vadd.f32 %v337, %v379
    %381 = vdwg.mxu0
    %382 = vmatpush.msra.mxu0 0.0
    %383 = vmatpush.msra.mxu0 0.0
    %384 = vmatpush.msra.mxu0 0.0
    %385 = vmatpush.msra.mxu0 0.0
    %386 = vmatpush.msra.mxu0 0.0
    %387 = vmatpush.msra.mxu0 0.0
    %388 = vmatpush.msra.mxu0 0.0
    %389 = vmatpush.msra.mxu0 0.0
    %390 = vmatpush.msra.mxu0 0.0
    %391 = vmatpush.msra.mxu0 0.0
    %392 = vmatpush.msra.mxu0 0.0
    %393 = vmatpush.msra.mxu0 0.0
    %394 = vmatpush.msra.mxu0 0.0
    %395 = vmatpush.msra.mxu0 0.0
    %v396 = vand.u32 %v283, 4294901760
    %v397 = vsub.f32 %v283, %v396
    %398 = vmatpush.msra.mxu0 %v397
    %v399 = vand.u32 %v261, 4294901760
    %v400 = vsub.f32 %v261, %v399
    %401 = vmatpush.msra.mxu0 %v400
    %v402 = vand.u32 %v271, 4294901760
    %v403 = vsub.f32 %v271, %v402
    %404 = vmatmul.f32.gmra.mxu0 %v403
    %v405 = vpop.f32.mrf.mxu0
    %v406 = vadd.f32 %v368, %v405
    %v407 = vand.u32 %v274, 4294901760
    %v408 = vsub.f32 %v274, %v407
    %409 = vmatmul.f32.gmra.mxu0 %v408
    %v410 = vpop.f32.mrf.mxu0
    %v411 = vadd.f32 %v372, %v410
    %v412 = vand.u32 %v277, 4294901760
    %v413 = vsub.f32 %v277, %v412
    %414 = vmatmul.f32.gmra.mxu0 %v413
    %v415 = vpop.f32.mrf.mxu0
    %v416 = vadd.f32 %v376, %v415
    %v417 = vand.u32 %v280, 4294901760
    %v418 = vsub.f32 %v280, %v417
    %419 = vmatmul.f32.gmra.mxu0 %v418
    %v420 = vpop.f32.mrf.mxu0
    %v421 = vadd.f32 %v380, %v420
    %422 = vdwg.mxu0
    %423 = vmatpush.msra.mxu0 0.0
    %424 = vmatpush.msra.mxu0 0.0
    %425 = vmatpush.msra.mxu0 0.0
    %426 = vmatpush.msra.mxu0 0.0
    %427 = vmatpush.msra.mxu0 0.0
    %428 = vmatpush.msra.mxu0 0.0
    %429 = vmatpush.msra.mxu0 0.0
    %430 = vmatpush.msra.mxu0 0.0
    %431 = vmatpush.msra.mxu0 0.0
    %432 = vmatpush.msra.mxu0 0.0
    %433 = vmatpush.msra.mxu0 0.0
    %434 = vmatpush.msra.mxu0 0.0
    %435 = vmatpush.msra.mxu0 0.0
    %436 = vmatpush.msra.mxu0 0.0
    %v437 = vand.u32 %v283, 4294901760
    %438 = vmatpush.msra.mxu0 %v437
    %v439 = vand.u32 %v261, 4294901760
    %440 = vmatpush.msra.mxu0 %v439
    %v441 = vand.u32 %v271, 4294901760
    %v442 = vsub.f32 %v271, %v441
    %v443 = vand.u32 %v442, 4294901760
    %444 = vmatmul.f32.gmra.mxu0 %v443
    %v445 = vpop.f32.mrf.mxu0
    %v446 = vadd.f32 %v406, %v445
    %v447 = vand.u32 %v274, 4294901760
    %v448 = vsub.f32 %v274, %v447
    %v449 = vand.u32 %v448, 4294901760
    %450 = vmatmul.f32.gmra.mxu0 %v449
    %v451 = vpop.f32.mrf.mxu0
    %v452 = vadd.f32 %v411, %v451
    %v453 = vand.u32 %v277, 4294901760
    %v454 = vsub.f32 %v277, %v453
    %v455 = vand.u32 %v454, 4294901760
    %456 = vmatmul.f32.gmra.mxu0 %v455
    %v457 = vpop.f32.mrf.mxu0
    %v458 = vadd.f32 %v416, %v457
    %v459 = vand.u32 %v280, 4294901760
    %v460 = vsub.f32 %v280, %v459
    %v461 = vand.u32 %v460, 4294901760
    %462 = vmatmul.f32.gmra.mxu0 %v461
    %v463 = vpop.f32.mrf.mxu0
    %v464 = vadd.f32 %v421, %v463
    %465 = vdwg.mxu0
    %466 = vmatpush.msra.mxu0 0.0
    %467 = vmatpush.msra.mxu0 0.0
    %468 = vmatpush.msra.mxu0 0.0
    %469 = vmatpush.msra.mxu0 0.0
    %470 = vmatpush.msra.mxu0 0.0
    %471 = vmatpush.msra.mxu0 0.0
    %472 = vmatpush.msra.mxu0 0.0
    %473 = vmatpush.msra.mxu0 0.0
    %474 = vmatpush.msra.mxu0 0.0
    %475 = vmatpush.msra.mxu0 0.0
    %476 = vmatpush.msra.mxu0 0.0
    %477 = vmatpush.msra.mxu0 0.0
    %478 = vmatpush.msra.mxu0 0.0
    %479 = vmatpush.msra.mxu0 0.0
    %v480 = vand.u32 %v283, 4294901760
    %v481 = vsub.f32 %v283, %v480
    %v482 = vand.u32 %v481, 4294901760
    %483 = vmatpush.msra.mxu0 %v482
    %v484 = vand.u32 %v261, 4294901760
    %v485 = vsub.f32 %v261, %v484
    %v486 = vand.u32 %v485, 4294901760
    %487 = vmatpush.msra.mxu0 %v486
    %v488 = vand.u32 %v271, 4294901760
    %489 = vmatmul.f32.gmra.mxu0 %v488
    %v490 = vpop.f32.mrf.mxu0
    %v491 = vadd.f32 %v446, %v490
    %v492 = vand.u32 %v274, 4294901760
    %493 = vmatmul.f32.gmra.mxu0 %v492
    %v494 = vpop.f32.mrf.mxu0
    %v495 = vadd.f32 %v452, %v494
    %v496 = vand.u32 %v277, 4294901760
    %497 = vmatmul.f32.gmra.mxu0 %v496
    %v498 = vpop.f32.mrf.mxu0
    %v499 = vadd.f32 %v458, %v498
    %v500 = vand.u32 %v280, 4294901760
    %501 = vmatmul.f32.gmra.mxu0 %v500
    %v502 = vpop.f32.mrf.mxu0
    %v503 = vadd.f32 %v464, %v502
    %504 = vdwg.mxu0
    %505 = vmatpush.msra.mxu0 0.0
    %506 = vmatpush.msra.mxu0 0.0
    %507 = vmatpush.msra.mxu0 0.0
    %508 = vmatpush.msra.mxu0 0.0
    %509 = vmatpush.msra.mxu0 0.0
    %510 = vmatpush.msra.mxu0 0.0
    %511 = vmatpush.msra.mxu0 0.0
    %512 = vmatpush.msra.mxu0 0.0
    %513 = vmatpush.msra.mxu0 0.0
    %514 = vmatpush.msra.mxu0 0.0
    %515 = vmatpush.msra.mxu0 0.0
    %516 = vmatpush.msra.mxu0 0.0
    %517 = vmatpush.msra.mxu0 0.0
    %518 = vmatpush.msra.mxu0 0.0
    %v519 = vand.u32 %v283, 4294901760
    %520 = vmatpush.msra.mxu0 %v519
    %v521 = vand.u32 %v261, 4294901760
    %522 = vmatpush.msra.mxu0 %v521
    %v523 = vand.u32 %v271, 4294901760
    %524 = vmatmul.f32.gmra.mxu0 %v523
    %v525 = vpop.f32.mrf.mxu0
    %v526 = vadd.f32 %v491, %v525
    %v527 = vand.u32 %v274, 4294901760
    %528 = vmatmul.f32.gmra.mxu0 %v527
    %v529 = vpop.f32.mrf.mxu0
    %v530 = vadd.f32 %v495, %v529
    %v531 = vand.u32 %v277, 4294901760
    %532 = vmatmul.f32.gmra.mxu0 %v531
    %v533 = vpop.f32.mrf.mxu0
    %v534 = vadd.f32 %v499, %v533
    %v535 = vand.u32 %v280, 4294901760
    %536 = vmatmul.f32.gmra.mxu0 %v535
    %v537 = vpop.f32.mrf.mxu0
    %v538 = vadd.f32 %v503, %v537
    %539 = vdwg.mxu0
    %540 = vmatpush.msra.mxu0 0.0
    %541 = vmatpush.msra.mxu0 0.0
    %542 = vmatpush.msra.mxu0 0.0
    %543 = vmatpush.msra.mxu0 0.0
    %544 = vmatpush.msra.mxu0 0.0
    %545 = vmatpush.msra.mxu0 0.0
    %546 = vmatpush.msra.mxu0 0.0
    %547 = vmatpush.msra.mxu0 0.0
    %548 = vmatpush.msra.mxu0 0.0
    %549 = vmatpush.msra.mxu0 0.0
    %550 = vmatpush.msra.mxu0 0.0
    %551 = vmatpush.msra.mxu0 0.0
    %552 = vmatpush.msra.mxu0 0.0
    %553 = vmatpush.msra.mxu0 0.0
    %v554 = vand.u32 %v286, 4294901760
    %555 = vmatpush.msra.mxu0 %v554
    %v556 = vand.u32 %v262, 4294901760
    %557 = vmatpush.msra.mxu0 %v556
    %v558 = vand.u32 %v271, 4294901760
    %v559 = vsub.f32 %v271, %v558
    %v560 = vand.u32 %v559, 4294901760
    %v561 = vsub.f32 %v559, %v560
    %v562 = vand.u32 %v561, 4294901760
    %563 = vmatmul.f32.gmra.mxu0 %v562
    %v564 = vpop.f32.mrf.mxu0
    %v565 = vadd.f32 0.0, %v564
    %v566 = vand.u32 %v274, 4294901760
    %v567 = vsub.f32 %v274, %v566
    %v568 = vand.u32 %v567, 4294901760
    %v569 = vsub.f32 %v567, %v568
    %v570 = vand.u32 %v569, 4294901760
    %571 = vmatmul.f32.gmra.mxu0 %v570
    %v572 = vpop.f32.mrf.mxu0
    %v573 = vadd.f32 0.0, %v572
    %v574 = vand.u32 %v277, 4294901760
    %v575 = vsub.f32 %v277, %v574
    %v576 = vand.u32 %v575, 4294901760
    %v577 = vsub.f32 %v575, %v576
    %v578 = vand.u32 %v577, 4294901760
    %579 = vmatmul.f32.gmra.mxu0 %v578
    %v580 = vpop.f32.mrf.mxu0
    %v581 = vadd.f32 0.0, %v580
    %v582 = vand.u32 %v280, 4294901760
    %v583 = vsub.f32 %v280, %v582
    %v584 = vand.u32 %v583, 4294901760
    %v585 = vsub.f32 %v583, %v584
    %v586 = vand.u32 %v585, 4294901760
    %587 = vmatmul.f32.gmra.mxu0 %v586
    %v588 = vpop.f32.mrf.mxu0
    %v589 = vadd.f32 0.0, %v588
    %590 = vdwg.mxu0
    %591 = vmatpush.msra.mxu0 0.0
    %592 = vmatpush.msra.mxu0 0.0
    %593 = vmatpush.msra.mxu0 0.0
    %594 = vmatpush.msra.mxu0 0.0
    %595 = vmatpush.msra.mxu0 0.0
    %596 = vmatpush.msra.mxu0 0.0
    %597 = vmatpush.msra.mxu0 0.0
    %598 = vmatpush.msra.mxu0 0.0
    %599 = vmatpush.msra.mxu0 0.0
    %600 = vmatpush.msra.mxu0 0.0
    %601 = vmatpush.msra.mxu0 0.0
    %602 = vmatpush.msra.mxu0 0.0
    %603 = vmatpush.msra.mxu0 0.0
    %604 = vmatpush.msra.mxu0 0.0
    %v605 = vand.u32 %v286, 4294901760
    %v606 = vsub.f32 %v286, %v605
    %v607 = vand.u32 %v606, 4294901760
    %v608 = vsub.f32 %v606, %v607
    %v609 = vand.u32 %v608, 4294901760
    %610 = vmatpush.msra.mxu0 %v609
    %v611 = vand.u32 %v262, 4294901760
    %v612 = vsub.f32 %v262, %v611
    %v613 = vand.u32 %v612, 4294901760
    %v614 = vsub.f32 %v612, %v613
    %v615 = vand.u32 %v614, 4294901760
    %616 = vmatpush.msra.mxu0 %v615
    %v617 = vand.u32 %v271, 4294901760
    %618 = vmatmul.f32.gmra.mxu0 %v617
    %v619 = vpop.f32.mrf.mxu0
    %v620 = vadd.f32 %v565, %v619
    %v621 = vand.u32 %v274, 4294901760
    %622 = vmatmul.f32.gmra.mxu0 %v621
    %v623 = vpop.f32.mrf.mxu0
    %v624 = vadd.f32 %v573, %v623
    %v625 = vand.u32 %v277, 4294901760
    %626 = vmatmul.f32.gmra.mxu0 %v625
    %v627 = vpop.f32.mrf.mxu0
    %v628 = vadd.f32 %v581, %v627
    %v629 = vand.u32 %v280, 4294901760
    %630 = vmatmul.f32.gmra.mxu0 %v629
    %v631 = vpop.f32.mrf.mxu0
    %v632 = vadd.f32 %v589, %v631
    %633 = vdwg.mxu0
    %634 = vmatpush.msra.mxu0 0.0
    %635 = vmatpush.msra.mxu0 0.0
    %636 = vmatpush.msra.mxu0 0.0
    %637 = vmatpush.msra.mxu0 0.0
    %638 = vmatpush.msra.mxu0 0.0
    %639 = vmatpush.msra.mxu0 0.0
    %640 = vmatpush.msra.mxu0 0.0
    %641 = vmatpush.msra.mxu0 0.0
    %642 = vmatpush.msra.mxu0 0.0
    %643 = vmatpush.msra.mxu0 0.0
    %644 = vmatpush.msra.mxu0 0.0
    %645 = vmatpush.msra.mxu0 0.0
    %646 = vmatpush.msra.mxu0 0.0
    %647 = vmatpush.msra.mxu0 0.0
    %v648 = vand.u32 %v286, 4294901760
    %v649 = vsub.f32 %v286, %v648
    %650 = vmatpush.msra.mxu0 %v649
    %v651 = vand.u32 %v262, 4294901760
    %v652 = vsub.f32 %v262, %v651
    %653 = vmatpush.msra.mxu0 %v652
    %v654 = vand.u32 %v271, 4294901760
    %v655 = vsub.f32 %v271, %v654
    %656 = vmatmul.f32.gmra.mxu0 %v655
    %v657 = vpop.f32.mrf.mxu0
    %v658 = vadd.f32 %v620, %v657
    %v659 = vand.u32 %v274, 4294901760
    %v660 = vsub.f32 %v274, %v659
    %661 = vmatmul.f32.gmra.mxu0 %v660
    %v662 = vpop.f32.mrf.mxu0
    %v663 = vadd.f32 %v624, %v662
    %v664 = vand.u32 %v277, 4294901760
    %v665 = vsub.f32 %v277, %v664
    %666 = vmatmul.f32.gmra.mxu0 %v665
    %v667 = vpop.f32.mrf.mxu0
    %v668 = vadd.f32 %v628, %v667
    %v669 = vand.u32 %v280, 4294901760
    %v670 = vsub.f32 %v280, %v669
    %671 = vmatmul.f32.gmra.mxu0 %v670
    %v672 = vpop.f32.mrf.mxu0
    %v673 = vadd.f32 %v632, %v672
    %674 = vdwg.mxu0
    %675 = vmatpush.msra.mxu0 0.0
    %676 = vmatpush.msra.mxu0 0.0
    %677 = vmatpush.msra.mxu0 0.0
    %678 = vmatpush.msra.mxu0 0.0
    %679 = vmatpush.msra.mxu0 0.0
    %680 = vmatpush.msra.mxu0 0.0
    %681 = vmatpush.msra.mxu0 0.0
    %682 = vmatpush.msra.mxu0 0.0
    %683 = vmatpush.msra.mxu0 0.0
    %684 = vmatpush.msra.mxu0 0.0
    %685 = vmatpush.msra.mxu0 0.0
    %686 = vmatpush.msra.mxu0 0.0
    %687 = vmatpush.msra.mxu0 0.0
    %688 = vmatpush.msra.mxu0 0.0
    %v689 = vand.u32 %v286, 4294901760
    %690 = vmatpush.msra.mxu0 %v689
    %v691 = vand.u32 %v262, 4294901760
    %692 = vmatpush.msra.mxu0 %v691
    %v693 = vand.u32 %v271, 4294901760
    %v694 = vsub.f32 %v271, %v693
    %v695 = vand.u32 %v694, 4294901760
    %696 = vmatmul.f32.gmra.mxu0 %v695
    %v697 = vpop.f32.mrf.mxu0
    %v698 = vadd.f32 %v658, %v697
    %v699 = vand.u32 %v274, 4294901760
    %v700 = vsub.f32 %v274, %v699
    %v701 = vand.u32 %v700, 4294901760
    %702 = vmatmul.f32.gmra.mxu0 %v701
    %v703 = vpop.f32.mrf.mxu0
    %v704 = vadd.f32 %v663, %v703
    %v705 = vand.u32 %v277, 4294901760
    %v706 = vsub.f32 %v277, %v705
    %v707 = vand.u32 %v706, 4294901760
    %708 = vmatmul.f32.gmra.mxu0 %v707
    %v709 = vpop.f32.mrf.mxu0
    %v710 = vadd.f32 %v668, %v709
    %v711 = vand.u32 %v280, 4294901760
    %v712 = vsub.f32 %v280, %v711
    %v713 = vand.u32 %v712, 4294901760
    %714 = vmatmul.f32.gmra.mxu0 %v713
    %v715 = vpop.f32.mrf.mxu0
    %v716 = vadd.f32 %v673, %v715
    %717 = vdwg.mxu0
    %718 = vmatpush.msra.mxu0 0.0
    %719 = vmatpush.msra.mxu0 0.0
    %720 = vmatpush.msra.mxu0 0.0
    %721 = vmatpush.msra.mxu0 0.0
    %722 = vmatpush.msra.mxu0 0.0
    %723 = vmatpush.msra.mxu0 0.0
    %724 = vmatpush.msra.mxu0 0.0
    %725 = vmatpush.msra.mxu0 0.0
    %726 = vmatpush.msra.mxu0 0.0
    %727 = vmatpush.msra.mxu0 0.0
    %728 = vmatpush.msra.mxu0 0.0
    %729 = vmatpush.msra.mxu0 0.0
    %730 = vmatpush.msra.mxu0 0.0
    %731 = vmatpush.msra.mxu0 0.0
    %v732 = vand.u32 %v286, 4294901760
    %v733 = vsub.f32 %v286, %v732
    %v734 = vand.u32 %v733, 4294901760
    %735 = vmatpush.msra.mxu0 %v734
    %v736 = vand.u32 %v262, 4294901760
    %v737 = vsub.f32 %v262, %v736
    %v738 = vand.u32 %v737, 4294901760
    %739 = vmatpush.msra.mxu0 %v738
    %v740 = vand.u32 %v271, 4294901760
    %741 = vmatmul.f32.gmra.mxu0 %v740
    %v742 = vpop.f32.mrf.mxu0
    %v743 = vadd.f32 %v698, %v742
    %v744 = vand.u32 %v274, 4294901760
    %745 = vmatmul.f32.gmra.mxu0 %v744
    %v746 = vpop.f32.mrf.mxu0
    %v747 = vadd.f32 %v704, %v746
    %v748 = vand.u32 %v277, 4294901760
    %749 = vmatmul.f32.gmra.mxu0 %v748
    %v750 = vpop.f32.mrf.mxu0
    %v751 = vadd.f32 %v710, %v750
    %v752 = vand.u32 %v280, 4294901760
    %753 = vmatmul.f32.gmra.mxu0 %v752
    %v754 = vpop.f32.mrf.mxu0
    %v755 = vadd.f32 %v716, %v754
    %756 = vdwg.mxu0
    %757 = vmatpush.msra.mxu0 0.0
    %758 = vmatpush.msra.mxu0 0.0
    %759 = vmatpush.msra.mxu0 0.0
    %760 = vmatpush.msra.mxu0 0.0
    %761 = vmatpush.msra.mxu0 0.0
    %762 = vmatpush.msra.mxu0 0.0
    %763 = vmatpush.msra.mxu0 0.0
    %764 = vmatpush.msra.mxu0 0.0
    %765 = vmatpush.msra.mxu0 0.0
    %766 = vmatpush.msra.mxu0 0.0
    %767 = vmatpush.msra.mxu0 0.0
    %768 = vmatpush.msra.mxu0 0.0
    %769 = vmatpush.msra.mxu0 0.0
    %770 = vmatpush.msra.mxu0 0.0
    %v771 = vand.u32 %v286, 4294901760
    %772 = vmatpush.msra.mxu0 %v771
    %v773 = vand.u32 %v262, 4294901760
    %774 = vmatpush.msra.mxu0 %v773
    %v775 = vand.u32 %v271, 4294901760
    %776 = vmatmul.f32.gmra.mxu0 %v775
    %v777 = vpop.f32.mrf.mxu0
    %v778 = vadd.f32 %v743, %v777
    %v779 = vand.u32 %v274, 4294901760
    %780 = vmatmul.f32.gmra.mxu0 %v779
    %v781 = vpop.f32.mrf.mxu0
    %v782 = vadd.f32 %v747, %v781
    %v783 = vand.u32 %v277, 4294901760
    %784 = vmatmul.f32.gmra.mxu0 %v783
    %v785 = vpop.f32.mrf.mxu0
    %v786 = vadd.f32 %v751, %v785
    %v787 = vand.u32 %v280, 4294901760
    %788 = vmatmul.f32.gmra.mxu0 %v787
    %v789 = vpop.f32.mrf.mxu0
    %v790 = vadd.f32 %v755, %v789
    %791 = vdwg.mxu0
    %v793 = vsel %vm35, %v267, 0
    %v796 = vsel %vm35, %v268, 0
    %798 = vmatpush.msra.mxu0 0.0
    %799 = vmatpush.msra.mxu0 0.0
    %800 = vmatpush.msra.mxu0 0.0
    %801 = vmatpush.msra.mxu0 0.0
    %802 = vmatpush.msra.mxu0 0.0
    %803 = vmatpush.msra.mxu0 0.0
    %804 = vmatpush.msra.mxu0 0.0
    %805 = vmatpush.msra.mxu0 0.0
    %806 = vmatpush.msra.mxu0 0.0
    %807 = vmatpush.msra.mxu0 0.0
    %808 = vmatpush.msra.mxu0 0.0
    %809 = vmatpush.msra.mxu0 0.0
    %810 = vmatpush.msra.mxu0 0.0
    %811 = vmatpush.msra.mxu0 0.0
    %v812 = vand.u32 %v793, 4294901760
    %813 = vmatpush.msra.mxu0 %v812
    %v814 = vand.u32 %v265, 4294901760
    %815 = vmatpush.msra.mxu0 %v814
    %v816 = vand.u32 %v271, 4294901760
    %v817 = vsub.f32 %v271, %v816
    %v818 = vand.u32 %v817, 4294901760
    %v819 = vsub.f32 %v817, %v818
    %v820 = vand.u32 %v819, 4294901760
    %821 = vmatmul.f32.gmra.mxu0 %v820
    %v822 = vpop.f32.mrf.mxu0
    %v823 = vadd.f32 0.0, %v822
    %v824 = vand.u32 %v274, 4294901760
    %v825 = vsub.f32 %v274, %v824
    %v826 = vand.u32 %v825, 4294901760
    %v827 = vsub.f32 %v825, %v826
    %v828 = vand.u32 %v827, 4294901760
    %829 = vmatmul.f32.gmra.mxu0 %v828
    %v830 = vpop.f32.mrf.mxu0
    %v831 = vadd.f32 0.0, %v830
    %v832 = vand.u32 %v277, 4294901760
    %v833 = vsub.f32 %v277, %v832
    %v834 = vand.u32 %v833, 4294901760
    %v835 = vsub.f32 %v833, %v834
    %v836 = vand.u32 %v835, 4294901760
    %837 = vmatmul.f32.gmra.mxu0 %v836
    %v838 = vpop.f32.mrf.mxu0
    %v839 = vadd.f32 0.0, %v838
    %v840 = vand.u32 %v280, 4294901760
    %v841 = vsub.f32 %v280, %v840
    %v842 = vand.u32 %v841, 4294901760
    %v843 = vsub.f32 %v841, %v842
    %v844 = vand.u32 %v843, 4294901760
    %845 = vmatmul.f32.gmra.mxu0 %v844
    %v846 = vpop.f32.mrf.mxu0
    %v847 = vadd.f32 0.0, %v846
    %848 = vdwg.mxu0
    %849 = vmatpush.msra.mxu0 0.0
    %850 = vmatpush.msra.mxu0 0.0
    %851 = vmatpush.msra.mxu0 0.0
    %852 = vmatpush.msra.mxu0 0.0
    %853 = vmatpush.msra.mxu0 0.0
    %854 = vmatpush.msra.mxu0 0.0
    %855 = vmatpush.msra.mxu0 0.0
    %856 = vmatpush.msra.mxu0 0.0
    %857 = vmatpush.msra.mxu0 0.0
    %858 = vmatpush.msra.mxu0 0.0
    %859 = vmatpush.msra.mxu0 0.0
    %860 = vmatpush.msra.mxu0 0.0
    %861 = vmatpush.msra.mxu0 0.0
    %862 = vmatpush.msra.mxu0 0.0
    %v863 = vand.u32 %v793, 4294901760
    %v864 = vsub.f32 %v793, %v863
    %v865 = vand.u32 %v864, 4294901760
    %v866 = vsub.f32 %v864, %v865
    %v867 = vand.u32 %v866, 4294901760
    %868 = vmatpush.msra.mxu0 %v867
    %v869 = vand.u32 %v265, 4294901760
    %v870 = vsub.f32 %v265, %v869
    %v871 = vand.u32 %v870, 4294901760
    %v872 = vsub.f32 %v870, %v871
    %v873 = vand.u32 %v872, 4294901760
    %874 = vmatpush.msra.mxu0 %v873
    %v875 = vand.u32 %v271, 4294901760
    %876 = vmatmul.f32.gmra.mxu0 %v875
    %v877 = vpop.f32.mrf.mxu0
    %v878 = vadd.f32 %v823, %v877
    %v879 = vand.u32 %v274, 4294901760
    %880 = vmatmul.f32.gmra.mxu0 %v879
    %v881 = vpop.f32.mrf.mxu0
    %v882 = vadd.f32 %v831, %v881
    %v883 = vand.u32 %v277, 4294901760
    %884 = vmatmul.f32.gmra.mxu0 %v883
    %v885 = vpop.f32.mrf.mxu0
    %v886 = vadd.f32 %v839, %v885
    %v887 = vand.u32 %v280, 4294901760
    %888 = vmatmul.f32.gmra.mxu0 %v887
    %v889 = vpop.f32.mrf.mxu0
    %v890 = vadd.f32 %v847, %v889
    %891 = vdwg.mxu0
    %892 = vmatpush.msra.mxu0 0.0
    %893 = vmatpush.msra.mxu0 0.0
    %894 = vmatpush.msra.mxu0 0.0
    %895 = vmatpush.msra.mxu0 0.0
    %896 = vmatpush.msra.mxu0 0.0
    %897 = vmatpush.msra.mxu0 0.0
    %898 = vmatpush.msra.mxu0 0.0
    %899 = vmatpush.msra.mxu0 0.0
    %900 = vmatpush.msra.mxu0 0.0
    %901 = vmatpush.msra.mxu0 0.0
    %902 = vmatpush.msra.mxu0 0.0
    %903 = vmatpush.msra.mxu0 0.0
    %904 = vmatpush.msra.mxu0 0.0
    %905 = vmatpush.msra.mxu0 0.0
    %v906 = vand.u32 %v793, 4294901760
    %v907 = vsub.f32 %v793, %v906
    %908 = vmatpush.msra.mxu0 %v907
    %v909 = vand.u32 %v265, 4294901760
    %v910 = vsub.f32 %v265, %v909
    %911 = vmatpush.msra.mxu0 %v910
    %v912 = vand.u32 %v271, 4294901760
    %v913 = vsub.f32 %v271, %v912
    %914 = vmatmul.f32.gmra.mxu0 %v913
    %v915 = vpop.f32.mrf.mxu0
    %v916 = vadd.f32 %v878, %v915
    %v917 = vand.u32 %v274, 4294901760
    %v918 = vsub.f32 %v274, %v917
    %919 = vmatmul.f32.gmra.mxu0 %v918
    %v920 = vpop.f32.mrf.mxu0
    %v921 = vadd.f32 %v882, %v920
    %v922 = vand.u32 %v277, 4294901760
    %v923 = vsub.f32 %v277, %v922
    %924 = vmatmul.f32.gmra.mxu0 %v923
    %v925 = vpop.f32.mrf.mxu0
    %v926 = vadd.f32 %v886, %v925
    %v927 = vand.u32 %v280, 4294901760
    %v928 = vsub.f32 %v280, %v927
    %929 = vmatmul.f32.gmra.mxu0 %v928
    %v930 = vpop.f32.mrf.mxu0
    %v931 = vadd.f32 %v890, %v930
    %932 = vdwg.mxu0
    %933 = vmatpush.msra.mxu0 0.0
    %934 = vmatpush.msra.mxu0 0.0
    %935 = vmatpush.msra.mxu0 0.0
    %936 = vmatpush.msra.mxu0 0.0
    %937 = vmatpush.msra.mxu0 0.0
    %938 = vmatpush.msra.mxu0 0.0
    %939 = vmatpush.msra.mxu0 0.0
    %940 = vmatpush.msra.mxu0 0.0
    %941 = vmatpush.msra.mxu0 0.0
    %942 = vmatpush.msra.mxu0 0.0
    %943 = vmatpush.msra.mxu0 0.0
    %944 = vmatpush.msra.mxu0 0.0
    %945 = vmatpush.msra.mxu0 0.0
    %946 = vmatpush.msra.mxu0 0.0
    %v947 = vand.u32 %v793, 4294901760
    %948 = vmatpush.msra.mxu0 %v947
    %v949 = vand.u32 %v265, 4294901760
    %950 = vmatpush.msra.mxu0 %v949
    %v951 = vand.u32 %v271, 4294901760
    %v952 = vsub.f32 %v271, %v951
    %v953 = vand.u32 %v952, 4294901760
    %954 = vmatmul.f32.gmra.mxu0 %v953
    %v955 = vpop.f32.mrf.mxu0
    %v956 = vadd.f32 %v916, %v955
    %v957 = vand.u32 %v274, 4294901760
    %v958 = vsub.f32 %v274, %v957
    %v959 = vand.u32 %v958, 4294901760
    %960 = vmatmul.f32.gmra.mxu0 %v959
    %v961 = vpop.f32.mrf.mxu0
    %v962 = vadd.f32 %v921, %v961
    %v963 = vand.u32 %v277, 4294901760
    %v964 = vsub.f32 %v277, %v963
    %v965 = vand.u32 %v964, 4294901760
    %966 = vmatmul.f32.gmra.mxu0 %v965
    %v967 = vpop.f32.mrf.mxu0
    %v968 = vadd.f32 %v926, %v967
    %v969 = vand.u32 %v280, 4294901760
    %v970 = vsub.f32 %v280, %v969
    %v971 = vand.u32 %v970, 4294901760
    %972 = vmatmul.f32.gmra.mxu0 %v971
    %v973 = vpop.f32.mrf.mxu0
    %v974 = vadd.f32 %v931, %v973
    %975 = vdwg.mxu0
    %976 = vmatpush.msra.mxu0 0.0
    %977 = vmatpush.msra.mxu0 0.0
    %978 = vmatpush.msra.mxu0 0.0
    %979 = vmatpush.msra.mxu0 0.0
    %980 = vmatpush.msra.mxu0 0.0
    %981 = vmatpush.msra.mxu0 0.0
    %982 = vmatpush.msra.mxu0 0.0
    %983 = vmatpush.msra.mxu0 0.0
    %984 = vmatpush.msra.mxu0 0.0
    %985 = vmatpush.msra.mxu0 0.0
    %986 = vmatpush.msra.mxu0 0.0
    %987 = vmatpush.msra.mxu0 0.0
    %988 = vmatpush.msra.mxu0 0.0
    %989 = vmatpush.msra.mxu0 0.0
    %v990 = vand.u32 %v793, 4294901760
    %v991 = vsub.f32 %v793, %v990
    %v992 = vand.u32 %v991, 4294901760
    %993 = vmatpush.msra.mxu0 %v992
    %v994 = vand.u32 %v265, 4294901760
    %v995 = vsub.f32 %v265, %v994
    %v996 = vand.u32 %v995, 4294901760
    %997 = vmatpush.msra.mxu0 %v996
    %v998 = vand.u32 %v271, 4294901760
    %999 = vmatmul.f32.gmra.mxu0 %v998
    %v1000 = vpop.f32.mrf.mxu0
    %v1001 = vadd.f32 %v956, %v1000
    %v1002 = vand.u32 %v274, 4294901760
    %1003 = vmatmul.f32.gmra.mxu0 %v1002
    %v1004 = vpop.f32.mrf.mxu0
    %v1005 = vadd.f32 %v962, %v1004
    %v1006 = vand.u32 %v277, 4294901760
    %1007 = vmatmul.f32.gmra.mxu0 %v1006
    %v1008 = vpop.f32.mrf.mxu0
    %v1009 = vadd.f32 %v968, %v1008
    %v1010 = vand.u32 %v280, 4294901760
    %1011 = vmatmul.f32.gmra.mxu0 %v1010
    %v1012 = vpop.f32.mrf.mxu0
    %v1013 = vadd.f32 %v974, %v1012
    %1014 = vdwg.mxu0
    %1015 = vmatpush.msra.mxu0 0.0
    %1016 = vmatpush.msra.mxu0 0.0
    %1017 = vmatpush.msra.mxu0 0.0
    %1018 = vmatpush.msra.mxu0 0.0
    %1019 = vmatpush.msra.mxu0 0.0
    %1020 = vmatpush.msra.mxu0 0.0
    %1021 = vmatpush.msra.mxu0 0.0
    %1022 = vmatpush.msra.mxu0 0.0
    %1023 = vmatpush.msra.mxu0 0.0
    %1024 = vmatpush.msra.mxu0 0.0
    %1025 = vmatpush.msra.mxu0 0.0
    %1026 = vmatpush.msra.mxu0 0.0
    %1027 = vmatpush.msra.mxu0 0.0
    %1028 = vmatpush.msra.mxu0 0.0
    %v1029 = vand.u32 %v793, 4294901760
    %1030 = vmatpush.msra.mxu0 %v1029
    %v1031 = vand.u32 %v265, 4294901760
    %1032 = vmatpush.msra.mxu0 %v1031
    %v1033 = vand.u32 %v271, 4294901760
    %1034 = vmatmul.f32.gmra.mxu0 %v1033
    %v1035 = vpop.f32.mrf.mxu0
    %v1036 = vadd.f32 %v1001, %v1035
    %v1037 = vand.u32 %v274, 4294901760
    %1038 = vmatmul.f32.gmra.mxu0 %v1037
    %v1039 = vpop.f32.mrf.mxu0
    %v1040 = vadd.f32 %v1005, %v1039
    %v1041 = vand.u32 %v277, 4294901760
    %1042 = vmatmul.f32.gmra.mxu0 %v1041
    %v1043 = vpop.f32.mrf.mxu0
    %v1044 = vadd.f32 %v1009, %v1043
    %v1045 = vand.u32 %v280, 4294901760
    %1046 = vmatmul.f32.gmra.mxu0 %v1045
    %v1047 = vpop.f32.mrf.mxu0
    %v1048 = vadd.f32 %v1013, %v1047
    %1049 = vdwg.mxu0
    %1050 = vmatpush.msra.mxu0 0.0
    %1051 = vmatpush.msra.mxu0 0.0
    %1052 = vmatpush.msra.mxu0 0.0
    %1053 = vmatpush.msra.mxu0 0.0
    %1054 = vmatpush.msra.mxu0 0.0
    %1055 = vmatpush.msra.mxu0 0.0
    %1056 = vmatpush.msra.mxu0 0.0
    %1057 = vmatpush.msra.mxu0 0.0
    %1058 = vmatpush.msra.mxu0 0.0
    %1059 = vmatpush.msra.mxu0 0.0
    %1060 = vmatpush.msra.mxu0 0.0
    %1061 = vmatpush.msra.mxu0 0.0
    %1062 = vmatpush.msra.mxu0 0.0
    %1063 = vmatpush.msra.mxu0 0.0
    %v1064 = vand.u32 %v796, 4294901760
    %1065 = vmatpush.msra.mxu0 %v1064
    %v1066 = vand.u32 %v266, 4294901760
    %1067 = vmatpush.msra.mxu0 %v1066
    %v1068 = vand.u32 %v271, 4294901760
    %v1069 = vsub.f32 %v271, %v1068
    %v1070 = vand.u32 %v1069, 4294901760
    %v1071 = vsub.f32 %v1069, %v1070
    %v1072 = vand.u32 %v1071, 4294901760
    %1073 = vmatmul.f32.gmra.mxu0 %v1072
    %v1074 = vpop.f32.mrf.mxu0
    %v1075 = vadd.f32 0.0, %v1074
    %v1076 = vand.u32 %v274, 4294901760
    %v1077 = vsub.f32 %v274, %v1076
    %v1078 = vand.u32 %v1077, 4294901760
    %v1079 = vsub.f32 %v1077, %v1078
    %v1080 = vand.u32 %v1079, 4294901760
    %1081 = vmatmul.f32.gmra.mxu0 %v1080
    %v1082 = vpop.f32.mrf.mxu0
    %v1083 = vadd.f32 0.0, %v1082
    %v1084 = vand.u32 %v277, 4294901760
    %v1085 = vsub.f32 %v277, %v1084
    %v1086 = vand.u32 %v1085, 4294901760
    %v1087 = vsub.f32 %v1085, %v1086
    %v1088 = vand.u32 %v1087, 4294901760
    %1089 = vmatmul.f32.gmra.mxu0 %v1088
    %v1090 = vpop.f32.mrf.mxu0
    %v1091 = vadd.f32 0.0, %v1090
    %v1092 = vand.u32 %v280, 4294901760
    %v1093 = vsub.f32 %v280, %v1092
    %v1094 = vand.u32 %v1093, 4294901760
    %v1095 = vsub.f32 %v1093, %v1094
    %v1096 = vand.u32 %v1095, 4294901760
    %1097 = vmatmul.f32.gmra.mxu0 %v1096
    %v1098 = vpop.f32.mrf.mxu0
    %v1099 = vadd.f32 0.0, %v1098
    %1100 = vdwg.mxu0
    %1101 = vmatpush.msra.mxu0 0.0
    %1102 = vmatpush.msra.mxu0 0.0
    %1103 = vmatpush.msra.mxu0 0.0
    %1104 = vmatpush.msra.mxu0 0.0
    %1105 = vmatpush.msra.mxu0 0.0
    %1106 = vmatpush.msra.mxu0 0.0
    %1107 = vmatpush.msra.mxu0 0.0
    %1108 = vmatpush.msra.mxu0 0.0
    %1109 = vmatpush.msra.mxu0 0.0
    %1110 = vmatpush.msra.mxu0 0.0
    %1111 = vmatpush.msra.mxu0 0.0
    %1112 = vmatpush.msra.mxu0 0.0
    %1113 = vmatpush.msra.mxu0 0.0
    %1114 = vmatpush.msra.mxu0 0.0
    %v1115 = vand.u32 %v796, 4294901760
    %v1116 = vsub.f32 %v796, %v1115
    %v1117 = vand.u32 %v1116, 4294901760
    %v1118 = vsub.f32 %v1116, %v1117
    %v1119 = vand.u32 %v1118, 4294901760
    %1120 = vmatpush.msra.mxu0 %v1119
    %v1121 = vand.u32 %v266, 4294901760
    %v1122 = vsub.f32 %v266, %v1121
    %v1123 = vand.u32 %v1122, 4294901760
    %v1124 = vsub.f32 %v1122, %v1123
    %v1125 = vand.u32 %v1124, 4294901760
    %1126 = vmatpush.msra.mxu0 %v1125
    %v1127 = vand.u32 %v271, 4294901760
    %1128 = vmatmul.f32.gmra.mxu0 %v1127
    %v1129 = vpop.f32.mrf.mxu0
    %v1130 = vadd.f32 %v1075, %v1129
    %v1131 = vand.u32 %v274, 4294901760
    %1132 = vmatmul.f32.gmra.mxu0 %v1131
    %v1133 = vpop.f32.mrf.mxu0
    %v1134 = vadd.f32 %v1083, %v1133
    %v1135 = vand.u32 %v277, 4294901760
    %1136 = vmatmul.f32.gmra.mxu0 %v1135
    %v1137 = vpop.f32.mrf.mxu0
    %v1138 = vadd.f32 %v1091, %v1137
    %v1139 = vand.u32 %v280, 4294901760
    %1140 = vmatmul.f32.gmra.mxu0 %v1139
    %v1141 = vpop.f32.mrf.mxu0
    %v1142 = vadd.f32 %v1099, %v1141
    %1143 = vdwg.mxu0
    %1144 = vmatpush.msra.mxu0 0.0
    %1145 = vmatpush.msra.mxu0 0.0
    %1146 = vmatpush.msra.mxu0 0.0
    %1147 = vmatpush.msra.mxu0 0.0
    %1148 = vmatpush.msra.mxu0 0.0
    %1149 = vmatpush.msra.mxu0 0.0
    %1150 = vmatpush.msra.mxu0 0.0
    %1151 = vmatpush.msra.mxu0 0.0
    %1152 = vmatpush.msra.mxu0 0.0
    %1153 = vmatpush.msra.mxu0 0.0
    %1154 = vmatpush.msra.mxu0 0.0
    %1155 = vmatpush.msra.mxu0 0.0
    %1156 = vmatpush.msra.mxu0 0.0
    %1157 = vmatpush.msra.mxu0 0.0
    %v1158 = vand.u32 %v796, 4294901760
    %v1159 = vsub.f32 %v796, %v1158
    %1160 = vmatpush.msra.mxu0 %v1159
    %v1161 = vand.u32 %v266, 4294901760
    %v1162 = vsub.f32 %v266, %v1161
    %1163 = vmatpush.msra.mxu0 %v1162
    %v1164 = vand.u32 %v271, 4294901760
    %v1165 = vsub.f32 %v271, %v1164
    %1166 = vmatmul.f32.gmra.mxu0 %v1165
    %v1167 = vpop.f32.mrf.mxu0
    %v1168 = vadd.f32 %v1130, %v1167
    %v1169 = vand.u32 %v274, 4294901760
    %v1170 = vsub.f32 %v274, %v1169
    %1171 = vmatmul.f32.gmra.mxu0 %v1170
    %v1172 = vpop.f32.mrf.mxu0
    %v1173 = vadd.f32 %v1134, %v1172
    %v1174 = vand.u32 %v277, 4294901760
    %v1175 = vsub.f32 %v277, %v1174
    %1176 = vmatmul.f32.gmra.mxu0 %v1175
    %v1177 = vpop.f32.mrf.mxu0
    %v1178 = vadd.f32 %v1138, %v1177
    %v1179 = vand.u32 %v280, 4294901760
    %v1180 = vsub.f32 %v280, %v1179
    %1181 = vmatmul.f32.gmra.mxu0 %v1180
    %v1182 = vpop.f32.mrf.mxu0
    %v1183 = vadd.f32 %v1142, %v1182
    %1184 = vdwg.mxu0
    %1185 = vmatpush.msra.mxu0 0.0
    %1186 = vmatpush.msra.mxu0 0.0
    %1187 = vmatpush.msra.mxu0 0.0
    %1188 = vmatpush.msra.mxu0 0.0
    %1189 = vmatpush.msra.mxu0 0.0
    %1190 = vmatpush.msra.mxu0 0.0
    %1191 = vmatpush.msra.mxu0 0.0
    %1192 = vmatpush.msra.mxu0 0.0
    %1193 = vmatpush.msra.mxu0 0.0
    %1194 = vmatpush.msra.mxu0 0.0
    %1195 = vmatpush.msra.mxu0 0.0
    %1196 = vmatpush.msra.mxu0 0.0
    %1197 = vmatpush.msra.mxu0 0.0
    %1198 = vmatpush.msra.mxu0 0.0
    %v1199 = vand.u32 %v796, 4294901760
    %1200 = vmatpush.msra.mxu0 %v1199
    %v1201 = vand.u32 %v266, 4294901760
    %1202 = vmatpush.msra.mxu0 %v1201
    %v1203 = vand.u32 %v271, 4294901760
    %v1204 = vsub.f32 %v271, %v1203
    %v1205 = vand.u32 %v1204, 4294901760
    %1206 = vmatmul.f32.gmra.mxu0 %v1205
    %v1207 = vpop.f32.mrf.mxu0
    %v1208 = vadd.f32 %v1168, %v1207
    %v1209 = vand.u32 %v274, 4294901760
    %v1210 = vsub.f32 %v274, %v1209
    %v1211 = vand.u32 %v1210, 4294901760
    %1212 = vmatmul.f32.gmra.mxu0 %v1211
    %v1213 = vpop.f32.mrf.mxu0
    %v1214 = vadd.f32 %v1173, %v1213
    %v1215 = vand.u32 %v277, 4294901760
    %v1216 = vsub.f32 %v277, %v1215
    %v1217 = vand.u32 %v1216, 4294901760
    %1218 = vmatmul.f32.gmra.mxu0 %v1217
    %v1219 = vpop.f32.mrf.mxu0
    %v1220 = vadd.f32 %v1178, %v1219
    %v1221 = vand.u32 %v280, 4294901760
    %v1222 = vsub.f32 %v280, %v1221
    %v1223 = vand.u32 %v1222, 4294901760
    %1224 = vmatmul.f32.gmra.mxu0 %v1223
    %v1225 = vpop.f32.mrf.mxu0
    %v1226 = vadd.f32 %v1183, %v1225
    %1227 = vdwg.mxu0
    %1228 = vmatpush.msra.mxu0 0.0
    %1229 = vmatpush.msra.mxu0 0.0
    %1230 = vmatpush.msra.mxu0 0.0
    %1231 = vmatpush.msra.mxu0 0.0
    %1232 = vmatpush.msra.mxu0 0.0
    %1233 = vmatpush.msra.mxu0 0.0
    %1234 = vmatpush.msra.mxu0 0.0
    %1235 = vmatpush.msra.mxu0 0.0
    %1236 = vmatpush.msra.mxu0 0.0
    %1237 = vmatpush.msra.mxu0 0.0
    %1238 = vmatpush.msra.mxu0 0.0
    %1239 = vmatpush.msra.mxu0 0.0
    %1240 = vmatpush.msra.mxu0 0.0
    %1241 = vmatpush.msra.mxu0 0.0
    %v1242 = vand.u32 %v796, 4294901760
    %v1243 = vsub.f32 %v796, %v1242
    %v1244 = vand.u32 %v1243, 4294901760
    %1245 = vmatpush.msra.mxu0 %v1244
    %v1246 = vand.u32 %v266, 4294901760
    %v1247 = vsub.f32 %v266, %v1246
    %v1248 = vand.u32 %v1247, 4294901760
    %1249 = vmatpush.msra.mxu0 %v1248
    %v1250 = vand.u32 %v271, 4294901760
    %1251 = vmatmul.f32.gmra.mxu0 %v1250
    %v1252 = vpop.f32.mrf.mxu0
    %v1253 = vadd.f32 %v1208, %v1252
    %v1254 = vand.u32 %v274, 4294901760
    %1255 = vmatmul.f32.gmra.mxu0 %v1254
    %v1256 = vpop.f32.mrf.mxu0
    %v1257 = vadd.f32 %v1214, %v1256
    %v1258 = vand.u32 %v277, 4294901760
    %1259 = vmatmul.f32.gmra.mxu0 %v1258
    %v1260 = vpop.f32.mrf.mxu0
    %v1261 = vadd.f32 %v1220, %v1260
    %v1262 = vand.u32 %v280, 4294901760
    %1263 = vmatmul.f32.gmra.mxu0 %v1262
    %v1264 = vpop.f32.mrf.mxu0
    %v1265 = vadd.f32 %v1226, %v1264
    %1266 = vdwg.mxu0
    %1267 = vmatpush.msra.mxu0 0.0
    %1268 = vmatpush.msra.mxu0 0.0
    %1269 = vmatpush.msra.mxu0 0.0
    %1270 = vmatpush.msra.mxu0 0.0
    %1271 = vmatpush.msra.mxu0 0.0
    %1272 = vmatpush.msra.mxu0 0.0
    %1273 = vmatpush.msra.mxu0 0.0
    %1274 = vmatpush.msra.mxu0 0.0
    %1275 = vmatpush.msra.mxu0 0.0
    %1276 = vmatpush.msra.mxu0 0.0
    %1277 = vmatpush.msra.mxu0 0.0
    %1278 = vmatpush.msra.mxu0 0.0
    %1279 = vmatpush.msra.mxu0 0.0
    %1280 = vmatpush.msra.mxu0 0.0
    %v1281 = vand.u32 %v796, 4294901760
    %1282 = vmatpush.msra.mxu0 %v1281
    %v1283 = vand.u32 %v266, 4294901760
    %1284 = vmatpush.msra.mxu0 %v1283
    %v1285 = vand.u32 %v271, 4294901760
    %1286 = vmatmul.f32.gmra.mxu0 %v1285
    %v1287 = vpop.f32.mrf.mxu0
    %v1288 = vadd.f32 %v1253, %v1287
    %v1289 = vand.u32 %v274, 4294901760
    %1290 = vmatmul.f32.gmra.mxu0 %v1289
    %v1291 = vpop.f32.mrf.mxu0
    %v1292 = vadd.f32 %v1257, %v1291
    %v1293 = vand.u32 %v277, 4294901760
    %1294 = vmatmul.f32.gmra.mxu0 %v1293
    %v1295 = vpop.f32.mrf.mxu0
    %v1296 = vadd.f32 %v1261, %v1295
    %v1297 = vand.u32 %v280, 4294901760
    %1298 = vmatmul.f32.gmra.mxu0 %v1297
    %v1299 = vpop.f32.mrf.mxu0
    %v1300 = vadd.f32 %v1265, %v1299
    %1301 = vdwg.mxu0
    %1302 = vst [vmem:[#allocation3] sm:$0xff] %v526
    %vm1303 = vcmask 785408
    %1304 = vst.msk [vmem:[#allocation3 + $0x8] sm:$0xff] %vm1303, %v778
    %1305 = vst [vmem:[#allocation3 + $0x10] sm:$0xff] %v530
    %1306 = vst.msk [vmem:[#allocation3 + $0x18] sm:$0xff] %vm1303, %v782
    %1307 = vst [vmem:[#allocation3 + $0x20] sm:$0xff] %v534
    %1308 = vst.msk [vmem:[#allocation3 + $0x28] sm:$0xff] %vm1303, %v786
    %1309 = vst [vmem:[#allocation3 + $0x30] sm:$0xff] %v538
    %1310 = vst.msk [vmem:[#allocation3 + $0x38] sm:$0xff] %vm1303, %v790
    %1311 = vst [vmem:[#allocation3 + $0x40] sm:$0xff] %v1036
    %1312 = vst.msk [vmem:[#allocation3 + $0x48] sm:$0xff] %vm1303, %v1288
    %1313 = vst [vmem:[#allocation3 + $0x50] sm:$0xff] %v1040
    %1314 = vst.msk [vmem:[#allocation3 + $0x58] sm:$0xff] %vm1303, %v1292
    %1315 = vst [vmem:[#allocation3 + $0x60] sm:$0xff] %v1044
    %1316 = vst.msk [vmem:[#allocation3 + $0x68] sm:$0xff] %vm1303, %v1296
    %1317 = vst [vmem:[#allocation3 + $0x70] sm:$0xff] %v1048
    %1318 = vst.msk [vmem:[#allocation3 + $0x78] sm:$0xff] %vm1303, %v1300
    // Predicated region
    $region10: #{tpu_custom_call.1} parent=1 // pred_check
      _
    $region11: #{tpu_custom_call.1} parent=1 // pred_check_branch
      %1320 = sbr.rel (0) target = $region13
    $region12: #{tpu_custom_call.1} parent=1 // pred_region
      %1322 = vsyncadd [#allocation4], 0
      %s1323 = sshll.u32 [#allocation3], 4
      %s1324 = int_to_ptr.vmem [resolvable:$true] %s1323
      %s1325 = sshll.u32 %s2, 4
      %s1326 = int_to_ptr.hbm [resolvable:$true] %s1325
      %1331 = dma.vmem_to_hbm [thread:$0]  %s1324, 2048, %s1326, [#allocation4], 256, 256, 16
    $region13: #{tpu_custom_call.1} parent=1 // pred_fallthru
      _
    // Predicated region
    $region14: #{tpu_custom_call.1} parent=1 // pred_check
      _
    $region15: #{tpu_custom_call.1} parent=1 // pred_check_branch
      %1333 = sbr.rel (0) target = $region17
    $region16: #{tpu_custom_call.1} parent=1 // pred_region
      %1335 = dma.done [#allocation4], 2048
    $region17: #{tpu_custom_call.1} parent=1 // pred_fallthru
      _
    %1336 = vsyncpa [#allocation4], 1

</llo_original>
